<compile_context>
chip_gen: v5e
topology: v5e:2x2
jax: 0.10.0
libtpu: 0.0.40
codegen_flags: <defaults>
</compile_context>

<pallas_src>
import functools

import jax
import jax.numpy as jnp
from jax.experimental import pallas as pl
from jax.experimental.pallas import tpu as pltpu

_LANE = 128
_SUBLANE = 8


def _round_up(x, m):
    return (x + m - 1) // m * m


def _vmem_capacity_bytes():
    """Physical VMEM per TensorCore; conservative fallback if the query fails
    (e.g. when tracing on a non-TPU host / interpret mode)."""
    try:
        return int(pltpu.get_tpu_info().vmem_capacity_bytes)
    except Exception:
        return 64 << 20  # v7x per-TC size: safe lower bound for all generations


def _choose_tm(M, H, itemsize, x_budget_bytes=16 * 1024 * 1024, row_cap=2048):
    """Rows per tile: double-buffered x tiles must fit x_budget_bytes."""
    per_row = max(1, H * itemsize)
    tm = max(_SUBLANE, x_budget_bytes // (2 * per_row))
    tm = min(tm, row_cap)
    tm = _round_up(min(tm, M), _SUBLANE)
    return tm


# ----------------------------------------------------------------------------
# Kernels
# ----------------------------------------------------------------------------
def _head_kernel_eval(x_ref, w_ref, b_ref, o_ref):
    # ReLU in f32, bf16 operands into the MXU, f32 accumulation.
    x = jnp.maximum(x_ref[...].astype(jnp.float32), 0.0)
    o_ref[...] = (
        jnp.dot(x.astype(w_ref.dtype), w_ref[...],
                preferred_element_type=jnp.float32)
        + b_ref[...]
    ).astype(o_ref.dtype)


def _head_kernel_train(seed_ref, x_ref, w_ref, b_ref, o_ref, *,
                       dropout_prob, block_rows):
    x = jnp.maximum(x_ref[...].astype(jnp.float32), 0.0)

    # Counter-based dropout mask: murmur3-style mix of the *global* element
    # index xor'd with the seed.  Pure int32 VPU work (iota / mul / xor /
    # shift / and / cmp) -> lowers on Mosaic and in interpret mode, no extra
    # HBM traffic, and every row tile gets an independent, well-mixed mask.
    shape = x.shape
    row0 = pl.program_id(0) * block_rows
    rows = jax.lax.broadcasted_iota(jnp.int32, shape, 0) + row0
    cols = jax.lax.broadcasted_iota(jnp.int32, shape, 1)
    h = (rows * jnp.int32(shape[1]) + cols) ^ seed_ref[0]

    def _lsr(v, k):  # logical right shift on int32 (arith shift + mask)
        return (v >> k) & jnp.int32((1 << (32 - k)) - 1)

    h = h * jnp.int32(-1640531527)   # 0x9E3779B9
    h = h ^ _lsr(h, 16)
    h = h * jnp.int32(-2048144789)   # 0x85EBCA6B
    h = h ^ _lsr(h, 13)
    h = h * jnp.int32(-1028477387)   # 0xC2B2AE35
    h = h ^ _lsr(h, 16)

    thresh = jnp.int32(min(int(dropout_prob * (1 << 24)), (1 << 24) - 1))
    keep = (h & jnp.int32(0x00FFFFFF)) >= thresh
    # NOTE: the 1/(1-p) scale is pre-folded into w_ref by the wrapper.
    x = jnp.where(keep, x, 0.0)

    o_ref[...] = (
        jnp.dot(x.astype(w_ref.dtype), w_ref[...],
                preferred_element_type=jnp.float32)
        + b_ref[...]
    ).astype(o_ref.dtype)


# ----------------------------------------------------------------------------
# pallas_call wrappers
# ----------------------------------------------------------------------------
def bert_linear_head(x, w_t, b, *, tm, dropout_prob=0.1, training=False, seed=0):
    """x: (M_pad, H), w_t: (H, C_pad) [bf16], b: (1, C_pad) -> (M_pad, C_pad)."""
    M, H = x.shape
    C_pad = w_t.shape[1]
    assert M % tm == 0 and C_pad % _LANE == 0
    grid = (M // tm,)

    x_bytes = tm * H * jnp.dtype(x.dtype).itemsize
    o_bytes = tm * C_pad * jnp.dtype(x.dtype).itemsize
    w_bytes = H * C_pad * jnp.dtype(w_t.dtype).itemsize
    b_bytes = _SUBLANE * C_pad * jnp.dtype(b.dtype).itemsize
    needed = 2 * (x_bytes + o_bytes + w_bytes + b_bytes)  # double-buffered
    # Clamp to 75% of the actual chip's VMEM (v7x has only 64 MiB per TC).
    ceiling = max(16 << 20, int(0.75 * _vmem_capacity_bytes()))
    vmem_limit = int(min(max(needed + (8 << 20), 16 << 20), ceiling))

    compiler_params = pltpu.CompilerParams(
        dimension_semantics=("parallel",),  # lets v7x shard row tiles over 2 TCs
        vmem_limit_bytes=vmem_limit,
    )
    out_shape = jax.ShapeDtypeStruct((M, C_pad), x.dtype)

    if training and dropout_prob > 0.0:
        kernel = functools.partial(
            _head_kernel_train, dropout_prob=dropout_prob, block_rows=tm)
        grid_spec = pltpu.PrefetchScalarGridSpec(
            num_scalar_prefetch=1,
            grid=grid,
            in_specs=[
                pl.BlockSpec((tm, H), lambda i, seed_ref: (i, 0)),
                pl.BlockSpec((H, C_pad), lambda i, seed_ref: (0, 0)),
                pl.BlockSpec((1, C_pad), lambda i, seed_ref: (0, 0)),
            ],
            out_specs=pl.BlockSpec((tm, C_pad), lambda i, seed_ref: (i, 0)),
        )
        return pl.pallas_call(
            kernel,
            out_shape=out_shape,
            grid_spec=grid_spec,
            compiler_params=compiler_params,
        )(jnp.asarray([seed], dtype=jnp.int32), x, w_t, b)

    # Eval path: no scalar prefetch, no seed plumbing.
    grid_spec = pltpu.PrefetchScalarGridSpec(
        num_scalar_prefetch=0,
        grid=grid,
        in_specs=[
            pl.BlockSpec((tm, H), lambda i: (i, 0)),
            pl.BlockSpec((H, C_pad), lambda i: (0, 0)),
            pl.BlockSpec((1, C_pad), lambda i: (0, 0)),
        ],
        out_specs=pl.BlockSpec((tm, C_pad), lambda i: (i, 0)),
    )
    return pl.pallas_call(
        _head_kernel_eval,
        out_shape=out_shape,
        grid_spec=grid_spec,
        compiler_params=compiler_params,
    )(x, w_t, b)


def prepare_fc_params(fc_weight, fc_bias, *, dropout_prob, training,
                      compute_dtype=jnp.bfloat16):
    """Hoisted fc-parameter prep: transpose, pad class dim to 128 lanes,
    fold the dropout 1/(1-p) scale into the weight, cast to bf16 for the MXU."""
    C, H = fc_weight.shape
    C_pad = _round_up(C, _LANE)
    w = fc_weight.T.astype(jnp.float32)
    if training and dropout_prob > 0.0:
        # logits = (mask*x*s) @ W^T + b == (mask*x) @ (s*W^T) + b
        w = w * jnp.float32(1.0 / (1.0 - dropout_prob))
    w_t = jnp.zeros((H, C_pad), compute_dtype).at[:, :C].set(w.astype(compute_dtype))
    b2d = jnp.zeros((1, C_pad), jnp.float32).at[:, :C].set(fc_bias.astype(jnp.float32))
    return w_t, b2d


def bert_linear_forward(bert_out, fc_weight, fc_bias, *, dropout_prob,
                        training=False, seed=0):
    """bert_out: (B, S, H) from the encoder.  Returns logits (B, S, C)."""
    B, S, H = bert_out.shape
    C = fc_weight.shape[0]
    # Keep the encoder dtype: a bf16 encoder output streams at half the bytes.
    x2d = bert_out.reshape(B * S, H)
    M = x2d.shape[0]

    w_t, b2d = prepare_fc_params(
        fc_weight, fc_bias, dropout_prob=dropout_prob, training=training)

    tm = _choose_tm(M, H, jnp.dtype(x2d.dtype).itemsize)
    M_pad = _round_up(M, tm)
    if M_pad != M:
        x2d = jnp.pad(x2d, ((0, M_pad - M), (0, 0)))

    logits = bert_linear_head(
        x2d, w_t, b2d, tm=tm,
        dropout_prob=dropout_prob, training=training, seed=seed,
    )
    return logits[:M, :C].reshape(B, S, C)


if __name__ == "__main__":
    # Small shapes implied by the module: hidden_size=32, num_classes=4,
    # BERT-style sequence output of shape (batch=2, seq=8, hidden=32).
    batch, seq, hidden, num_classes = 2, 8, 32, 4
    dropout_prob = 0.1

    key = jax.random.PRNGKey(0)
    k_x, k_w, k_b = jax.random.split(key, 3)

    # TODO(synk): the `bert` encoder is an external submodule passed to
    # __init__; its sequence output is synthesized here as the kernel input.
    bert_out = jax.random.normal(k_x, (batch, seq, hidden), dtype=jnp.float32)

    # Deterministic nn.Linear-style init: U(-1/sqrt(H), 1/sqrt(H))
    bound = 1.0 / (hidden ** 0.5)
    fc_weight = jax.random.uniform(
        k_w, (num_classes, hidden), dtype=jnp.float32, minval=-bound, maxval=bound
    )
    fc_bias = jax.random.uniform(
        k_b, (num_classes,), dtype=jnp.float32, minval=-bound, maxval=bound
    )

    # Eval mode (dropout = identity), jitted so the param prep fuses with the
    # kernel launch instead of running eagerly in front of it.
    eval_fwd = jax.jit(functools.partial(
        bert_linear_forward, dropout_prob=dropout_prob, training=False))
    logits = jax.block_until_ready(eval_fwd(bert_out, fc_weight, fc_bias))

    # Pure-JAX reference with the same bf16 matmul operands / f32 accumulation.
    x_rel = jnp.maximum(bert_out.reshape(batch * seq, hidden), 0.0)
    ref = (
        jnp.dot(x_rel.astype(jnp.bfloat16), fc_weight.T.astype(jnp.bfloat16),
                preferred_element_type=jnp.float32)
        + fc_bias
    ).reshape(batch, seq, num_classes)
    assert logits.shape == (batch, seq, num_classes)
    assert jnp.allclose(logits, ref, atol=1e-2, rtol=1e-2), \
        float(jnp.max(jnp.abs(logits - ref)))

    # Exercise the training path (hash-based per-element dropout with the
    # 1/(1-p) scale folded into W).  The RNG stream intentionally does not
    # match PyTorch's dropout bit-for-bit.
    train_fwd = jax.jit(functools.partial(
        bert_linear_forward, dropout_prob=dropout_prob, training=True, seed=1234))
    logits_tr = jax.block_until_ready(train_fwd(bert_out, fc_weight, fc_bias))
    assert logits_tr.shape == (batch, seq, num_classes)
    assert bool(jnp.all(jnp.isfinite(logits_tr)))

    print("KERNEL_OK")
</pallas_src>

<mosaic_0001>
module attributes {stable_mosaic.version = 11 : i64} {
  func.func @_head_kernel_eval(%arg0: i32, %arg1: memref<16x32xf32, #tpu.memory_space<vmem>>, %arg2: memref<32x128xbf16, #tpu.memory_space<vmem>>, %arg3: memref<1x128xf32, #tpu.memory_space<vmem>>, %arg4: memref<16x128xf32, #tpu.memory_space<vmem>>) attributes {dimension_semantics = [#tpu.dimension_semantics<parallel>], iteration_bounds = array<i64: 1>, scalar_prefetch = 0 : i64, scratch_operands = 0 : i64, tpu.core_type = #tpu.core_type<tc>, window_params = [{transform_indices = @transform_0, window_bounds = array<i64: 16, 32>}, {pipeline_mode = #tpu.pipeline_mode<synchronous>, transform_indices = @transform_1, window_bounds = array<i64: 32, 128>}, {pipeline_mode = #tpu.pipeline_mode<synchronous>, transform_indices = @transform_2, window_bounds = array<i64: 1, 128>}, {transform_indices = @transform_3, window_bounds = array<i64: 16, 128>}]} {
    %c0 = arith.constant 0 : index
    %c0_0 = arith.constant 0 : index
    %0 = vector.load %arg1[%c0, %c0_0] : memref<16x32xf32, #tpu.memory_space<vmem>>, vector<16x32xf32>
    %cst = arith.constant 0.000000e+00 : f32
    %1 = vector.broadcast %cst : f32 to vector<16x32xf32>
    %2 = arith.maximumf %0, %1 : vector<16x32xf32>
    %3 = arith.truncf %2 : vector<16x32xf32> to vector<16x32xbf16>
    %c0_1 = arith.constant 0 : index
    %c0_2 = arith.constant 0 : index
    %4 = vector.load %arg2[%c0_1, %c0_2] : memref<32x128xbf16, #tpu.memory_space<vmem>>, vector<32x128xbf16>
    %cst_3 = arith.constant dense<0.000000e+00> : vector<16x128xf32>
    %5 = tpu.matmul %3, %4, %cst_3 {dimension_numbers = #tpu.dot_dimension_numbers<[1], [0], [0], [1], [0, 0, 1, 1], [], []>} : vector<16x32xbf16>, vector<32x128xbf16>, vector<16x128xf32> -> vector<16x128xf32>
    %c0_4 = arith.constant 0 : index
    %c0_5 = arith.constant 0 : index
    %6 = vector.load %arg3[%c0_4, %c0_5] : memref<1x128xf32, #tpu.memory_space<vmem>>, vector<1x128xf32>
    %7 = vector.broadcast %6 : vector<1x128xf32> to vector<16x128xf32>
    %8 = arith.addf %5, %7 : vector<16x128xf32>
    %c0_6 = arith.constant 0 : index
    %c0_7 = arith.constant 0 : index
    %9 = vector.load %arg4[%c0_6, %c0_7] : memref<16x128xf32, #tpu.memory_space<vmem>>, vector<16x128xf32>
    tpu.vector_store %arg4[%c0_6, %c0_7], %8 {strides = array<i32>} : memref<16x128xf32, #tpu.memory_space<vmem>>, vector<16x128xf32>,
    return
  }
  func.func @transform_0(%arg0: i32) -> (i32, i32) {
    %c0_i32 = arith.constant 0 : i32
    %c0_i32_0 = arith.constant 0 : i32
    return %arg0, %c0_i32 : i32, i32
  }
  func.func @transform_1(%arg0: i32) -> (i32, i32) {
    %c0_i32 = arith.constant 0 : i32
    %c0_i32_0 = arith.constant 0 : i32
    %c0_i32_1 = arith.constant 0 : i32
    return %c0_i32, %c0_i32_0 : i32, i32
  }
  func.func @transform_2(%arg0: i32) -> (i32, i32) {
    %c0_i32 = arith.constant 0 : i32
    %c0_i32_0 = arith.constant 0 : i32
    %c0_i32_1 = arith.constant 0 : i32
    return %c0_i32, %c0_i32_0 : i32, i32
  }
  func.func @transform_3(%arg0: i32) -> (i32, i32) {
    %c0_i32 = arith.constant 0 : i32
    %c0_i32_0 = arith.constant 0 : i32
    return %arg0, %c0_i32 : i32, i32
  }
}

</mosaic_0001>

<llo_original>
// kernel: bert_linear_forward.1
$region0: #{bert_linear_forward.1}
  #allocation0 [shape = 'u32[]', space=smem, size = 0x4, offset = 0x4, fixed_abs, tag = 'smem constant byte address 0x4 - core index']
  #allocation1 [shape = 'u32[72,128]{1,0:T(1,128)}', space=vmem, size = 0x9000, scoped, tag = 'internal scratch']
  %s0 = inlined_call_operand.vmem [shape: f32[16,32], index: 0, kind: input, shape index: {}]
  %s1 = inlined_call_operand.vmem [shape: bf16[32,128], index: 1, kind: input, shape index: {}]
  %s2 = inlined_call_operand.vmem [shape: f32[1,128], index: 2, kind: input, shape index: {}]
  %s3 = inlined_call_operand.vmem [shape: f32[16,128], index: 3, kind: output, shape index: {}]
  %s4 = sld [smem:[#allocation0]]
  $region22: #{bert_linear_forward.1} parent=0
    _
  %s6 = ssub.s32 1, %s4
  %s7 = scalar_select 0, %s6, %s4
  // Predicated region
  $region2: #{bert_linear_forward.1} parent=0 // pred_check
    _
  $region3: #{bert_linear_forward.1} parent=0 // pred_check_branch
    %9 = sbr.rel (0) target = $region5
  $region4: #{bert_linear_forward.1} parent=0 // pred_region
    _
  $region5: #{bert_linear_forward.1} parent=0 // pred_fallthru
    _
  // Predicated region
  $region6: #{bert_linear_forward.1} parent=0 // pred_check
    _
  $region7: #{bert_linear_forward.1} parent=0 // pred_check_branch
    %11 = sbr.rel (0) target = $region9
  $region8: #{bert_linear_forward.1} parent=0 // pred_region
    _
  $region9: #{bert_linear_forward.1} parent=0 // pred_fallthru
    _
  // Predicated region
  $region10: #{bert_linear_forward.1} parent=0 // pred_check
    _
  $region11: #{bert_linear_forward.1} parent=0 // pred_check_branch
    %13 = sbr.rel (0) target = $region13
  $region12: #{bert_linear_forward.1} parent=0 // pred_region
    _
  $region13: #{bert_linear_forward.1} parent=0 // pred_fallthru
    _
  %v15 = vld [vmem:[%s0] sm:$0xff]
  %v16 = vld [vmem:[%s0 + $0x8] sm:$0xff]
  %v17 = vmax.f32 %v15, 0.0
  %v18 = vmax.f32 %v16, 0.0
  %v19 = vpack.c.bf16 %v18, %v17
  %v20 = vld [vmem:[%s1] sm:$0xf]
  %v21 = vld [vmem:[%s1 + $0x4] sm:$0xf]
  %v22 = vld [vmem:[%s1 + $0x8] sm:$0xf]
  %v23 = vld [vmem:[%s1 + $0xc] sm:$0xf]
  %v24 = vld [vmem:[%s2] sm:$0x1]
  %v26 = vperm.slane %v24, 0
  %v32 = vunpack.c.l.b16 %v20
  %v33 = vunpack.c.l.b16 %v21
  %v34 = vunpack.c.l.b16 %v22
  %v35 = vunpack.c.l.b16 %v23
  %v36 = vpack.c.b16 %v33, %v32
  %v37 = vpack.c.b16 %v35, %v34
  %vm40 = vcmask 261120
  %v42 = vsel %vm40, %v19, 0
  %44 = vmatpush.bf16.msra.mxu0 0
  %45 = vmatpush.bf16.msra.mxu0 0
  %46 = vmatpush.bf16.msra.mxu0 0
  %47 = vmatpush.bf16.msra.mxu0 0
  %48 = vmatpush.bf16.msra.mxu0 0
  %49 = vmatpush.bf16.msra.mxu0 0
  %50 = vmatpush.bf16.msra.mxu0 %v37
  %51 = vmatpush.bf16.msra.mxu0 %v36
  %52 = vmatmul.bf16.gmra.mxu0 %v42
  %v53 = vpop.f32.mrf.mxu0
  %v54 = vadd.f32 %v26, %v53
  %v55 = vpop.f32.mrf.mxu0
  %v56 = vadd.f32 %v26, %v55
  %57 = vdwg.mxu0
  %58 = vst [vmem:[%s3] sm:$0xff] %v54
  %59 = vst [vmem:[%s3 + $0x8] sm:$0xff] %v56
  // Predicated region
  $region14: #{bert_linear_forward.1} parent=0 // pred_check
    _
  $region15: #{bert_linear_forward.1} parent=0 // pred_check_branch
    %61 = sbr.rel (0) target = $region17
  $region16: #{bert_linear_forward.1} parent=0 // pred_region
    _
  $region17: #{bert_linear_forward.1} parent=0 // pred_fallthru
    _
  // Predicated region
  $region18: #{bert_linear_forward.1} parent=0 // pred_check
    _
  $region19: #{bert_linear_forward.1} parent=0 // pred_check_branch
    %63 = sbr.rel (0) target = $region21
  $region20: #{bert_linear_forward.1} parent=0 // pred_region
    _
  $region21: #{bert_linear_forward.1} parent=0 // pred_fallthru
    _

</llo_original>
